<compile_context>
chip_gen: v6e
topology: v6e:2x2x1
jax: 0.10.0
libtpu: 0.0.40
codegen_flags: <defaults>
</compile_context>

<pallas_src>
import functools

import jax
import jax.numpy as jnp
from jax.experimental import pallas as pl
from jax.experimental.pallas import tpu as pltpu


def _make_kernel(sigma: float, tile_t: int):
    neg_inv_wf = -1.0 / (2.0 * float(sigma) ** 2)

    def kernel(in_len_ref, tgt_len_ref, attn_ref, out_ref):
        # in_len_ref / tgt_len_ref: scalar-prefetch int32 (B,) arrays in SMEM.
        # attn_ref: (1, TT, I) VMEM tile of attention (native dtype).
        # out_ref:  (1, 1, 1, I) f32 partial row-sum for this (batch, t-tile).
        b = pl.program_id(0)
        tt = pl.program_id(1)
        t_start = tt * tile_t

        in_len_i = in_len_ref[b]      # int32 scalar
        tgt_len_i = tgt_len_ref[b]    # int32 scalar

        # Fully-padded tile (all rows beyond target length): just emit zeros,
        # skip all exp/VPU work.
        @pl.when(t_start >= tgt_len_i)
        def _():
            out_ref[...] = jnp.zeros_like(out_ref)

        @pl.when(t_start < tgt_len_i)
        def _():
            attn = attn_ref[0].astype(jnp.float32)          # (TT, I)
            TT, I = attn.shape

            in_len_f = in_len_i.astype(jnp.float32)
            tgt_len_f = tgt_len_i.astype(jnp.float32)

            # 1-D factored index math (O(T + I) divides / compares).
            i_idx = jax.lax.broadcasted_iota(jnp.int32, (1, I), 1)            # (1, I)
            t_idx = jax.lax.broadcasted_iota(jnp.int32, (TT, 1), 0) + t_start  # (TT, 1)
            i_sc = i_idx.astype(jnp.float32) / in_len_f                        # (1, I)
            t_sc = t_idx.astype(jnp.float32) / tgt_len_f                       # (TT, 1)

            diff = i_sc - t_sc                                                 # (TT, I)
            w = 1.0 - jnp.exp(diff * diff * neg_inv_wf)

            # Padding mask; also neutralizes any ragged-edge / OOB garbage rows.
            inside = (i_idx < in_len_i) & (t_idx < tgt_len_i)                  # (TT, I)
            prod = jnp.where(inside, attn * w, 0.0)

            # Sublane (T-axis) reduce only; lane reduce is left to JAX.
            rowsum = jnp.sum(prod, axis=0, keepdims=True)                      # (1, I)
            out_ref[...] = rowsum.reshape(out_ref.shape)

    return kernel


@functools.partial(jax.jit, static_argnames=("sigma", "reduction", "tile_t"))
def guided_attention_loss(attention, input_lengths, target_lengths,
                          sigma: float = 0.2, reduction: str = "mean",
                          tile_t=None):
    """Pallas implementation of GuidedAttentionLoss.forward.

    attention:       (B, max_target_len, max_input_len), any float dtype
    input_lengths:   (B,) int
    target_lengths:  (B,) int
    """
    B, T, I = attention.shape
    if tile_t is None:
        tile_t = T if T <= 512 else 512
    # Block second-to-last dim must be a multiple of 8 or equal the full dim.
    assert tile_t == T or tile_t % 8 == 0, "tile_t must equal T or be a multiple of 8"
    n_t = pl.cdiv(T, tile_t)

    in_len = input_lengths.astype(jnp.int32)
    tgt_len = target_lengths.astype(jnp.int32)
    # NOTE: attention stays in its native dtype for the HBM load; cast to f32
    # happens in vregs inside the kernel.

    partials = pl.pallas_call(
        _make_kernel(sigma, tile_t),
        out_shape=jax.ShapeDtypeStruct((B, n_t, 1, I), jnp.float32),
        grid_spec=pltpu.PrefetchScalarGridSpec(
            num_scalar_prefetch=2,
            grid=(B, n_t),
            in_specs=[
                pl.BlockSpec((1, tile_t, I), lambda b, t, il, tl: (b, t, 0)),
            ],
            out_specs=pl.BlockSpec((1, 1, 1, I), lambda b, t, il, tl: (b, t, 0, 0)),
        ),
        compiler_params=pltpu.CompilerParams(
            dimension_semantics=("parallel", "parallel")),
    )(in_len, tgt_len, attention)

    if reduction == "mean":
        return jnp.sum(partials) / (B * T * I)
    # reduction == "batch": per-sample mean over (targets, inputs)
    return jnp.sum(partials, axis=(1, 2, 3)) / (T * I)


def _reference_loss(attention, input_lengths, target_lengths,
                    sigma=0.2, reduction="mean"):
    """Pure-JAX port of the PyTorch module (verification only)."""
    B, T, I = attention.shape
    wf = 2.0 * sigma ** 2
    in_len = input_lengths.astype(jnp.float32).reshape(B, 1, 1)
    tgt_len = target_lengths.astype(jnp.float32).reshape(B, 1, 1)
    t_mesh = jnp.arange(T, dtype=jnp.float32).reshape(1, T, 1)   # target axis
    i_mesh = jnp.arange(I, dtype=jnp.float32).reshape(1, 1, I)   # input axis
    w = 1.0 - jnp.exp(-((i_mesh / in_len - t_mesh / tgt_len) ** 2) / wf)  # (B,T,I), already transposed
    outside = (i_mesh >= in_len) | (t_mesh >= tgt_len)
    w = jnp.where(outside, 0.0, w)
    loss = attention.astype(jnp.float32) * w
    if reduction == "mean":
        return loss.mean()
    return loss.mean(axis=(-1, -2))


if __name__ == "__main__":
    key = jax.random.PRNGKey(0)

    # --- Test 1: docstring example from the PyTorch module (expected 0.1142) ---
    alignments = jnp.array(
        [
            [[0.8, 0.2, 0.0], [0.4, 0.6, 0.0], [0.2, 0.8, 0.0], [0.0, 0.0, 0.0]],
            [[0.6, 0.2, 0.2], [0.1, 0.7, 0.2], [0.3, 0.4, 0.3], [0.2, 0.3, 0.5]],
        ],
        dtype=jnp.float32,
    )
    il0 = jnp.array([2, 3], dtype=jnp.int32)
    tl0 = jnp.array([3, 4], dtype=jnp.int32)
    out0 = jax.block_until_ready(
        guided_attention_loss(alignments, il0, tl0, sigma=0.2, reduction="mean"))
    ref0 = _reference_loss(alignments, il0, tl0, sigma=0.2, reduction="mean")
    assert jnp.allclose(out0, ref0, atol=1e-5, rtol=1e-5), (out0, ref0)
    assert abs(float(out0) - 0.1142) < 1e-3, float(out0)

    # --- Test 2: random batch, multi-tile T axis (ragged last tile + skipped
    #             fully-padded tiles), both reductions, f32 and bf16 inputs ---
    B, T, I = 2, 40, 8   # (batch, max_target_len, max_input_len)
    attention = jax.random.uniform(key, (B, T, I), dtype=jnp.float32)
    input_lengths = jnp.array([8, 5], dtype=jnp.int32)
    target_lengths = jnp.array([37, 25], dtype=jnp.int32)

    out = jax.block_until_ready(
        guided_attention_loss(attention, input_lengths, target_lengths,
                              sigma=0.2, reduction="mean", tile_t=16))
    ref = _reference_loss(attention, input_lengths, target_lengths,
                          sigma=0.2, reduction="mean")
    assert jnp.allclose(out, ref, atol=1e-5, rtol=1e-5), (out, ref)

    out_b = jax.block_until_ready(
        guided_attention_loss(attention, input_lengths, target_lengths,
                              sigma=0.2, reduction="batch", tile_t=16))
    ref_b = _reference_loss(attention, input_lengths, target_lengths,
                            sigma=0.2, reduction="batch")
    assert jnp.allclose(out_b, ref_b, atol=1e-5, rtol=1e-5), (out_b, ref_b)

    # Native bf16 attention (halved HBM traffic path); reference sees the same
    # bf16-rounded inputs, so results should agree to f32 precision.
    attn_bf16 = attention.astype(jnp.bfloat16)
    out_bf = jax.block_until_ready(
        guided_attention_loss(attn_bf16, input_lengths, target_lengths,
                              sigma=0.2, reduction="mean", tile_t=16))
    ref_bf = _reference_loss(attn_bf16, input_lengths, target_lengths,
                             sigma=0.2, reduction="mean")
    assert jnp.allclose(out_bf, ref_bf, atol=1e-5, rtol=1e-5), (out_bf, ref_bf)

    print("KERNEL_OK")
</pallas_src>

<mosaic_0001>
module attributes {stable_mosaic.version = 11 : i64} {
  func.func @kernel(%arg0: i32, %arg1: i32, %arg2: memref<2xi32, #tpu.memory_space<smem>>, %arg3: memref<2xi32, #tpu.memory_space<smem>>, %arg4: memref<1x4x3xf32, #tpu.memory_space<vmem>>, %arg5: memref<1x1x1x3xf32, #tpu.memory_space<vmem>>) attributes {dimension_semantics = [#tpu.dimension_semantics<parallel>, #tpu.dimension_semantics<parallel>], iteration_bounds = array<i64: 2, 1>, scalar_prefetch = 2 : i64, scratch_operands = 0 : i64, tpu.core_type = #tpu.core_type<tc>, window_params = [{transform_indices = @transform_0, window_bounds = array<i64: 1, 4, 3>}, {transform_indices = @transform_1, window_bounds = array<i64: 1, 1, 1, 3>}]} {
    %c4_i32 = arith.constant 4 : i32
    %0 = arith.muli %arg1, %c4_i32 : i32
    %1 = arith.index_cast %arg0 : i32 to index
    %2 = memref.load %arg2[%1] : memref<2xi32, #tpu.memory_space<smem>>
    %3 = arith.index_cast %arg0 : i32 to index
    %4 = memref.load %arg3[%3] : memref<2xi32, #tpu.memory_space<smem>>
    %5 = arith.cmpi sge, %0, %4 : i32
    %6 = arith.extui %5 : i1 to i32
    %c0_i32 = arith.constant 0 : i32
    %7 = arith.cmpi ne, %6, %c0_i32 : i32
    scf.if %7 {
      %cst = arith.constant 0.000000e+00 : f32
      %11 = vector.broadcast %cst : f32 to vector<1x1x1x3xf32>
      %c0 = arith.constant 0 : index
      %c0_1 = arith.constant 0 : index
      %c0_2 = arith.constant 0 : index
      %c0_3 = arith.constant 0 : index
      %12 = vector.load %arg5[%c0, %c0_1, %c0_2, %c0_3] : memref<1x1x1x3xf32, #tpu.memory_space<vmem>>, vector<1x1x1x3xf32>
      tpu.vector_store %arg5[%c0, %c0_1, %c0_2, %c0_3], %11 {strides = array<i32>} : memref<1x1x1x3xf32, #tpu.memory_space<vmem>>, vector<1x1x1x3xf32>,
    } else {
    }
    %8 = arith.cmpi slt, %0, %4 : i32
    %9 = arith.extui %8 : i1 to i32
    %c0_i32_0 = arith.constant 0 : i32
    %10 = arith.cmpi ne, %9, %c0_i32_0 : i32
    scf.if %10 {
      %c0 = arith.constant 0 : index
      %c0_1 = arith.constant 0 : index
      %c0_2 = arith.constant 0 : index
      %11 = vector.load %arg4[%c0, %c0_1, %c0_2] : memref<1x4x3xf32, #tpu.memory_space<vmem>>, vector<1x4x3xf32>
      %12 = vector.shape_cast %11 : vector<1x4x3xf32> to vector<4x3xf32>
      %13 = arith.sitofp %2 : i32 to f32
      %14 = arith.sitofp %4 : i32 to f32
      %15 = tpu.iota {dimensions = array<i32: 1>} : vector<1x3xi32>
      %16 = tpu.iota {dimensions = array<i32: 0>} : vector<4x1xi32>
      %17 = vector.broadcast %0 : i32 to vector<4x1xi32>
      %18 = arith.addi %16, %17 : vector<4x1xi32>
      %19 = arith.sitofp %15 : vector<1x3xi32> to vector<1x3xf32>
      %20 = vector.broadcast %13 : f32 to vector<1x3xf32>
      %21 = arith.divf %19, %20 : vector<1x3xf32>
      %22 = arith.sitofp %18 : vector<4x1xi32> to vector<4x1xf32>
      %23 = vector.broadcast %14 : f32 to vector<4x1xf32>
      %24 = arith.divf %22, %23 : vector<4x1xf32>
      %25 = vector.broadcast %21 : vector<1x3xf32> to vector<4x3xf32>
      %26 = vector.broadcast %24 : vector<4x1xf32> to vector<4x3xf32>
      %27 = arith.subf %25, %26 : vector<4x3xf32>
      %28 = arith.mulf %27, %27 : vector<4x3xf32>
      %cst = arith.constant -1.250000e+01 : f32
      %29 = vector.broadcast %cst : f32 to vector<4x3xf32>
      %30 = arith.mulf %28, %29 : vector<4x3xf32>
      %31 = math.exp %30 : vector<4x3xf32>
      %cst_3 = arith.constant 1.000000e+00 : f32
      %32 = vector.broadcast %cst_3 : f32 to vector<4x3xf32>
      %33 = arith.subf %32, %31 : vector<4x3xf32>
      %34 = vector.broadcast %2 : i32 to vector<1x3xi32>
      %35 = arith.cmpi slt, %15, %34 : vector<1x3xi32>
      %36 = vector.broadcast %4 : i32 to vector<4x1xi32>
      %37 = arith.cmpi slt, %18, %36 : vector<4x1xi32>
      %38 = vector.broadcast %35 : vector<1x3xi1> to vector<4x3xi1>
      %39 = vector.broadcast %37 : vector<4x1xi1> to vector<4x3xi1>
      %40 = arith.andi %38, %39 : vector<4x3xi1>
      %41 = arith.mulf %12, %33 : vector<4x3xf32>
      %cst_4 = arith.constant 0.000000e+00 : f32
      %42 = vector.broadcast %cst_4 : f32 to vector<4x3xf32>
      %43 = arith.select %40, %41, %42 : vector<4x3xi1>, vector<4x3xf32>
      %cst_5 = arith.constant dense<0.000000e+00> : vector<3xf32>
      %44 = vector.multi_reduction <add>, %43, %cst_5 [0] : vector<4x3xf32> to vector<3xf32>
      %45 = vector.shape_cast %44 : vector<3xf32> to vector<1x3xf32>
      %46 = vector.shape_cast %45 : vector<1x3xf32> to vector<1x1x1x3xf32>
      %c0_6 = arith.constant 0 : index
      %c0_7 = arith.constant 0 : index
      %c0_8 = arith.constant 0 : index
      %c0_9 = arith.constant 0 : index
      %47 = vector.load %arg5[%c0_6, %c0_7, %c0_8, %c0_9] : memref<1x1x1x3xf32, #tpu.memory_space<vmem>>, vector<1x1x1x3xf32>
      tpu.vector_store %arg5[%c0_6, %c0_7, %c0_8, %c0_9], %46 {strides = array<i32>} : memref<1x1x1x3xf32, #tpu.memory_space<vmem>>, vector<1x1x1x3xf32>,
    } else {
    }
    return
  }
  func.func @transform_0(%arg0: i32, %arg1: i32, %arg2: memref<2xi32, #tpu.memory_space<smem>>, %arg3: memref<2xi32, #tpu.memory_space<smem>>) -> (i32, i32, i32) {
    %c0_i32 = arith.constant 0 : i32
    %c0_i32_0 = arith.constant 0 : i32
    return %arg0, %arg1, %c0_i32 : i32, i32, i32
  }
  func.func @transform_1(%arg0: i32, %arg1: i32, %arg2: memref<2xi32, #tpu.memory_space<smem>>, %arg3: memref<2xi32, #tpu.memory_space<smem>>) -> (i32, i32, i32, i32) {
    %c0_i32 = arith.constant 0 : i32
    %c0_i32_0 = arith.constant 0 : i32
    %c0_i32_1 = arith.constant 0 : i32
    return %arg0, %arg1, %c0_i32, %c0_i32_0 : i32, i32, i32, i32
  }
}

</mosaic_0001>

<llo_original>
// kernel: guided_attention_loss.1
$region0: #{guided_attention_loss.1}
  #allocation0 [shape = 'u32[]', space=smem, size = 0x4, offset = 0x4, fixed_abs, tag = 'smem constant byte address 0x4 - core index']
  #allocation1 [shape = 'u32[144,128]{1,0:T(1,128)}', space=vmem, size = 0x12000, scoped, tag = 'internal scratch']
  #allocation2 [shape = 's32[1]{0}', space=sflag, size = 0x4, scoped, tag = 'scoped memory for guided_attention_loss.1']
  #allocation3 [shape = 'u8[512]{0}', space=smem, size = 0x200, scoped, tag = 'prefetched SMEM operand 0']
  #allocation4 [shape = 'u8[512]{0}', space=smem, size = 0x200, scoped, tag = 'prefetched SMEM operand 1']
  %s0 = inlined_call_operand.vmem [shape: s32[2], index: 0, kind: input, shape index: {}]
  %s1 = inlined_call_operand.vmem [shape: s32[2], index: 1, kind: input, shape index: {}]
  %s2 = inlined_call_operand.vmem [shape: f32[2,4,3], index: 2, kind: input, shape index: {}]
  %s3 = inlined_call_operand.vmem [shape: f32[2,1,1,3], index: 3, kind: output, shape index: {}]
  %s4 = sld [smem:[#allocation0]]
  $region45: #{guided_attention_loss.1} parent=0
    _
  %s6 = ssub.s32 1, %s4
  %s7 = scalar_select 0, %s6, %s4
  %s8 = sshll.u32 %s0, 4
  %s9 = int_to_ptr.vmem [resolvable:$true] %s8
  %11 = dma.vmem_to_smem %s9, 16, [#allocation3], [#allocation2]
  %s12 = sshll.u32 %s1, 4
  %s13 = int_to_ptr.vmem [resolvable:$true] %s12
  %15 = dma.vmem_to_smem %s13, 16, [#allocation4], [#allocation2]
  %16 = dma.done [#allocation2], 32
  %17 = sfence
  loop: start=0, step=1, limit=4
  $region2: #{guided_attention_loss.1} parent=0 // loop_pre_header
    _
  $region3: #{guided_attention_loss.1} parent=0 // loop_header
    %s19 = sphi 0, %s23
    %p20 = scmp.ge.s32.totalorder %s19, 4
    %s26 = sphi 0, %s38
    %s27 = sphi 0, %s34
    %s28 = sphi 0, %s26
    %s29 = sphi 0, %s27
    %s30 = sphi 0, %s28
    %s31 = sphi 0, %s29
    %s43 = sphi 0, %s45
    %s46 = sphi 0, %s43
    %s47 = sphi 0, %s46
    %s63 = sphi 0, %s47
    %s71 = sphi 0, %s73
    %s74 = sphi 0, %s71
    %s75 = sphi 0, %s74
    %s91 = sphi 0, %s75
  $region4: #{guided_attention_loss.1} parent=0 // loop_header_branch
    %22 = sbr.rel (%p20) target = $region8
  $region5: #{guided_attention_loss.1} parent=0 // loop_body
    %s24 = ssub.s32 %s19, 1
    %s25 = ssub.s32 %s19, 2
    %s32 = sadd.s32 1, %s27
    %p33 = scmp.ge.s32.totalorder %s32, 1
    %s34 = scalar_select %p33, 0, %s32
    %s35 = sadd.s32 1, %s26
    %s36 = scalar_select %p33, %s35, %s26
    %p37 = scmp.ge.s32.totalorder %s36, 2
    %s38 = scalar_select %p37, 0, %s36
    %s39 = ssub.s32 %s26, %s38
    %s40 = ssub.s32 %s27, %s34
    %s41 = sor.u32 %s39, %s40
    %p42 = scmp.eq.s32.totalorder %s41, 0
    %s44 = sadd.s32 %s43, 1
    %s45 = scalar_select %p42, %s43, %s44
    %p48 = pneg %p42
    %p49 = scmp.eq.s32.totalorder %s19, 1
    %p50 = por %p48, %p49
    %p51 = scmp.ne.s32.totalorder %s43, %s46
    %p52 = scmp.eq.s32.totalorder %s19, 0
    %p53 = por %p51, %p52
    %p54 = scmp.ne.s32.totalorder %s43, %s46
    %p55 = scmp.eq.s32.totalorder %s24, 1
    %p56 = por %p54, %p55
    %p57 = scmp.ne.s32.totalorder %s46, %s47
    %p58 = scmp.eq.s32.totalorder %s24, 0
    %p59 = por %p57, %p58
    %p60 = scmp.ne.s32.totalorder %s46, %s47
    %p61 = scmp.eq.s32.totalorder %s25, 1
    %p62 = por %p60, %p61
    %p64 = scmp.ne.s32.totalorder %s47, %s63
    %p65 = scmp.eq.s32.totalorder %s25, 0
    %p66 = por %p64, %p65
    %s67 = ssub.s32 %s26, %s38
    %s68 = ssub.s32 %s27, %s34
    %s69 = sor.u32 %s67, %s68
    %p70 = scmp.eq.s32.totalorder %s69, 0
    %s72 = sadd.s32 %s71, 1
    %s73 = scalar_select %p70, %s71, %s72
    %p76 = pneg %p70
    %p77 = scmp.eq.s32.totalorder %s19, 1
    %p78 = por %p76, %p77
    %p79 = scmp.ne.s32.totalorder %s71, %s74
    %p80 = scmp.eq.s32.totalorder %s19, 0
    %p81 = por %p79, %p80
    %p82 = scmp.ne.s32.totalorder %s71, %s74
    %p83 = scmp.eq.s32.totalorder %s24, 1
    %p84 = por %p82, %p83
    %p85 = scmp.ne.s32.totalorder %s74, %s75
    %p86 = scmp.eq.s32.totalorder %s24, 0
    %p87 = por %p85, %p86
    %p88 = scmp.ne.s32.totalorder %s74, %s75
    %p89 = scmp.eq.s32.totalorder %s25, 1
    %p90 = por %p88, %p89
    %p92 = scmp.ne.s32.totalorder %s75, %s91
    %p93 = scmp.eq.s32.totalorder %s25, 0
    %p94 = por %p92, %p93
    %p95 = scmp.le.s32.totalorder 1, %s19
    %p96 = scmp.lt.s32.totalorder %s19, 3
    %p97 = pnand %p95, %p96
    %p98 = pneg %p97
    // Predicated region
    $region9: #{guided_attention_loss.1} parent=5 // pred_check
      _
    $region10: #{guided_attention_loss.1} parent=5 // pred_check_branch
      %100 = sbr.rel (%p97) target = $region12
    $region11: #{guided_attention_loss.1} parent=5 // pred_region
      %s101 = ssub.s32 %s19, 1
    $region12: #{guided_attention_loss.1} parent=5 // pred_fallthru
      _
    %p102 = scmp.lt.s32.totalorder %s19, 2
    // Predicated region
    $region13: #{guided_attention_loss.1} parent=5 // pred_check
      %p103 = pneg %p102
    $region14: #{guided_attention_loss.1} parent=5 // pred_check_branch
      %105 = sbr.rel (%p103) target = $region16
    $region15: #{guided_attention_loss.1} parent=5 // pred_region
      // Predicated region
      $region17: #{guided_attention_loss.1} parent=15 // pred_check
        %p106 = pneg %p53
      $region18: #{guided_attention_loss.1} parent=15 // pred_check_branch
        %108 = sbr.rel (%p106) target = $region20
      $region19: #{guided_attention_loss.1} parent=15 // pred_region
        %p109 = scmp.lt.s32.totalorder %s26, 1
        %s110 = scalar_select %p109, %s26, 1
        %p111 = scmp.lt.s32.totalorder %s27, 0
        %s112 = scalar_select %p111, %s27, 0
        %s113 = sadd.s32 %s112, %s110
        %s114 = smul.addr %s113, 4
        %s115 = scalar_lea.vmem %s2, %s114
      $region20: #{guided_attention_loss.1} parent=15 // pred_fallthru
        _
    $region16: #{guided_attention_loss.1} parent=5 // pred_fallthru
      _
    %p116 = scmp.le.s32.totalorder 1, %s19
    %p117 = scmp.lt.s32.totalorder %s19, 3
    %p118 = pnand %p116, %p117
    %p119 = pneg %p118
    // Predicated region
    $region21: #{guided_attention_loss.1} parent=5 // pred_check
      _
    $region22: #{guided_attention_loss.1} parent=5 // pred_check_branch
      %121 = sbr.rel (%p118) target = $region24
    $region23: #{guided_attention_loss.1} parent=5 // pred_region
      %s122 = ssub.s32 %s19, 1
      %p123 = scmp.lt.s32.totalorder %s28, 1
      %s124 = scalar_select %p123, %s28, 1
      %p125 = scmp.lt.s32.totalorder %s29, 0
      %s126 = scalar_select %p125, %s29, 0
      %s127 = sadd.s32 %s126, %s124
      %s128 = smul.addr %s127, 4
      %s129 = scalar_lea.vmem %s2, %s128
      %p130 = pneg %p59
      %p131 = pneg %p56
      %p132 = pneg %p87
      %p133 = pneg %p84
      %p134 = scmp.lt.s32.totalorder %s28, 1
      %s135 = scalar_select %p134, %s28, 1
      %p136 = scmp.lt.s32.totalorder %s29, 0
      %s137 = scalar_select %p136, %s29, 0
      %s138 = sadd.s32 %s137, %s135
      %s139 = scalar_lea.vmem %s3, %s138
      %p140 = scmp.lt.s32.totalorder %s28, 1
      %s141 = scalar_select %p140, %s28, 1
      %p142 = scmp.lt.s32.totalorder %s29, 0
      %s143 = scalar_select %p142, %s29, 0
      %s144 = sadd.s32 %s143, %s141
      %s145 = smul.addr %s144, 4
      %s146 = scalar_lea.vmem %s2, %s145
      %p147 = scmp.lt.s32.totalorder %s28, 1
      %s148 = scalar_select %p147, %s28, 1
      %p149 = scmp.lt.s32.totalorder %s29, 0
      %s150 = scalar_select %p149, %s29, 0
      %s151 = sadd.s32 %s150, %s148
      %s152 = scalar_lea.vmem %s3, %s151
      %s153 = smul.u32 %s29, 4
      %s154 = sld [smem:[#allocation3 + %s28]]
      %s155 = sld [smem:[#allocation4 + %s28]]
      %p156 = scmp.ge.s32.totalorder %s153, %s155
      // Predicated region
      $region25: #{guided_attention_loss.1} parent=23 // pred_check
        %p157 = pneg %p156
      $region26: #{guided_attention_loss.1} parent=23 // pred_check_branch
        %159 = sbr.rel (%p157) target = $region28
      $region27: #{guided_attention_loss.1} parent=23 // pred_region
        %vm160 = vcmask 16384
        %161 = vst.msk [vmem:[%s152] sm:$0x1] %vm160, 0.0
      $region28: #{guided_attention_loss.1} parent=23 // pred_fallthru
        _
      %p162 = scmp.lt.s32.totalorder %s153, %s155
      // Predicated region
      $region29: #{guided_attention_loss.1} parent=23 // pred_check
        %p163 = pneg %p162
      $region30: #{guided_attention_loss.1} parent=23 // pred_check_branch
        %165 = sbr.rel (%p163) target = $region32
      $region31: #{guided_attention_loss.1} parent=23 // pred_region
        %v166 = vld [vmem:[%s146] sm:$0xf]
        %s167 = scvt.s32.f32 %s154
        %s168 = scvt.s32.f32 %s155
        %v169 = vlaneseq
        %v170 = vand.u32 %v169, 127
        %v171 = vlaneseq
        %v172 = vshrl.u32 %v171, 7
        %v173 = vstv %s153
        %v174 = vadd.s32 %v172, %v173
        %v175 = vcvt.s32.f32 %v170
        %v176 = vstv %s167
        %v177 = vrcp.pop %v176
        %v178 = vmul.f32 %v175, %v177
        %v179 = vcvt.s32.f32 %v174
        %v180 = vstv %s168
        %v181 = vrcp.pop %v180
        %v182 = vmul.f32 %v179, %v181
        %v183 = vsub.f32 %v178, %v182
        %v184 = vmul.f32 %v183, %v183
        %v185 = vmul.f32 %v184, -12.5
        %v186 = vmul.f32 %v185, 1.442695
        %v187 = vpow.pop %v186
        %v188 = vsub.f32 1.0, %v187
        %v189 = vstv %s154
        %vm190 = vcmp.lt.s32.totalorder %v170, %v189
        %v191 = vstv %s155
        %vm192 = vcmp.lt.s32.totalorder %v174, %v191
        %v193 = vsel %vm190, 1, 0
        %vm194 = vcmp.eq.s32.totalorder %v193, 1
        %v195 = vsel %vm192, 1, 0
        %vm196 = vcmp.eq.s32.totalorder %v195, 1
        %vm197 = vmand %vm194, %vm196
        %v198 = vmul.f32 %v166, %v188
        %v199 = vsel %vm197, %v198, 0.0
        %vm200 = vcmask 19456
        %v201 = vsel %vm200, %v199, 0.0
        %v202 = vrot.slane %v201, 4
        %v203 = vadd.f32 %v201, %v202
        %v204 = vrot.slane %v203, 2
        %v205 = vadd.f32 %v203, %v204
        %v206 = vrot.slane %v205, 1
        %v207 = vadd.f32 %v205, %v206
        %vm208 = vcmask 16384
        %209 = vst.msk [vmem:[%s152] sm:$0x1] %vm208, %v207
      $region32: #{guided_attention_loss.1} parent=23 // pred_fallthru
        _
      %p210 = scmp.lt.s32.totalorder %s28, 1
      %s211 = scalar_select %p210, %s28, 1
      %p212 = scmp.lt.s32.totalorder %s29, 0
      %s213 = scalar_select %p212, %s29, 0
      %s214 = sadd.s32 %s213, %s211
      %s215 = scalar_lea.vmem %s3, %s214
      // Predicated region
      $region33: #{guided_attention_loss.1} parent=23 // pred_check
        %p216 = pneg %p84
      $region34: #{guided_attention_loss.1} parent=23 // pred_check_branch
        %218 = sbr.rel (%p216) target = $region36
      $region35: #{guided_attention_loss.1} parent=23 // pred_region
        _
      $region36: #{guided_attention_loss.1} parent=23 // pred_fallthru
        _
    $region24: #{guided_attention_loss.1} parent=5 // pred_fallthru
      _
    %p219 = scmp.le.s32.totalorder 2, %s19
    // Predicated region
    $region37: #{guided_attention_loss.1} parent=5 // pred_check
      %p220 = pneg %p219
    $region38: #{guided_attention_loss.1} parent=5 // pred_check_branch
      %222 = sbr.rel (%p220) target = $region40
    $region39: #{guided_attention_loss.1} parent=5 // pred_region
      %s223 = ssub.s32 %s19, 2
      // Predicated region
      $region41: #{guided_attention_loss.1} parent=39 // pred_check
        %p224 = pneg %p90
      $region42: #{guided_attention_loss.1} parent=39 // pred_check_branch
        %226 = sbr.rel (%p224) target = $region44
      $region43: #{guided_attention_loss.1} parent=39 // pred_region
        %p227 = scmp.lt.s32.totalorder %s30, 1
        %s228 = scalar_select %p227, %s30, 1
        %p229 = scmp.lt.s32.totalorder %s31, 0
        %s230 = scalar_select %p229, %s31, 0
        %s231 = sadd.s32 %s230, %s228
        %s232 = scalar_lea.vmem %s3, %s231
      $region44: #{guided_attention_loss.1} parent=39 // pred_fallthru
        _
    $region40: #{guided_attention_loss.1} parent=5 // pred_fallthru
      _
  $region6: #{guided_attention_loss.1} parent=0 // loop_footer
    %s23 = sadd.s32 1, %s19
  $region7: #{guided_attention_loss.1} parent=0 // loop_footer_branch
    %18 = sbr.rel target = $region3
  $region8: #{guided_attention_loss.1} parent=0 // loop_exit
    _

</llo_original>
